<compile_context>
chip_gen: v7x
topology: tpu7x:2x2x1
jax: 0.10.0
libtpu: 0.0.40
codegen_flags: <defaults>
</compile_context>

<pallas_src>
import functools

import jax
import jax.numpy as jnp
from jax import lax
from jax.experimental import pallas as pl
from jax.experimental.pallas import tpu as pltpu

MARGIN = 0.1
EPS = 1e-8  # torch F.cosine_similarity default eps


def _pairwise_loss_kernel(e1_ref, e2_ref, lbl_ref, out_ref, *, n_rows):
    """Per-tile partial sum of the pairwise cosine-margin loss.

    e1_ref, e2_ref : (TILE_N, D)  embeddings (any float dtype, cast in-kernel)
    lbl_ref        : (TILE_N, 1)  f32 labels
    out_ref        : (1, 8, 128)  partial sum broadcast over the block
    """
    i = pl.program_id(0)
    tile_n = e1_ref.shape[0]

    e1 = e1_ref[...].astype(jnp.float32)
    e2 = e2_ref[...].astype(jnp.float32)
    lbl = lbl_ref[...]

    # Cosine similarity along the feature (lane) axis.  rsqrt keeps the
    # transcendental on the EUP and avoids a serial sqrt->div chain.
    dot = jnp.sum(e1 * e2, axis=1, keepdims=True)       # (TILE_N, 1)
    n1sq = jnp.sum(e1 * e1, axis=1, keepdims=True)
    n2sq = jnp.sum(e2 * e2, axis=1, keepdims=True)
    inv = lax.rsqrt(jnp.maximum(n1sq, EPS * EPS)) * lax.rsqrt(
        jnp.maximum(n2sq, EPS * EPS))                   # == 1/(max(n1,eps)*max(n2,eps))
    sim = dot * inv

    # General-label form (matches the torch module for any label values).
    loss = lbl * (1.0 - sim) + (1.0 - lbl) * jnp.maximum(MARGIN - sim, 0.0)

    # Mask rows past the true batch size in the (possibly partial) last tile.
    # The select replaces any garbage-row NaN/Inf with 0 *before* the sum.
    row = lax.broadcasted_iota(jnp.int32, (tile_n, 1), 0) + i * tile_n
    loss = jnp.where(row < n_rows, loss, 0.0)

    out_ref[...] = jnp.full(out_ref.shape, jnp.sum(loss), dtype=jnp.float32)


def _vmem_limit_bytes():
    """Generation-aware scoped-VMEM limit (trace-time hardware query)."""
    phys = 64 * 1024 * 1024  # conservative default: v7x has 64 MiB per TC
    try:
        info = pltpu.get_tpu_info()
        phys = int(getattr(info, "vmem_capacity_bytes", phys))
    except Exception:
        pass
    if phys >= 128 * 1024 * 1024:   # v5e / v6e
        return 64 * 1024 * 1024
    return 48 * 1024 * 1024         # v7x


def pairwise_loss(emb1, emb2, labels):
    """emb1, emb2: (N, D) float (f32 or bf16); labels: (N,). Returns scalar f32."""
    N, D = emb1.shape
    itemsize = jnp.dtype(emb1.dtype).itemsize

    # Sublane multiple for the batch (second-to-last) block dim.
    row_mult = 8 if itemsize >= 4 else (16 if itemsize == 2 else 32)

    vmem_limit = _vmem_limit_bytes()
    budget = (vmem_limit * 3) // 4  # headroom for compiler-managed temporaries

    # Explicit per-row VMEM accounting:
    #   pipeline buffers : 2 bufs x (2 embeddings x D x itemsize
    #                      + 512 B labels -- a (tile_n,1) f32 block is lane-padded
    #                        to 128 lanes, i.e. 512 B/row, NOT 4 B/row)
    #   compute temps    : f32 copies / product of the embedding tile (~12 B/feat)
    #   column temps     : a few (tile_n,1) f32 reduction results (~2 KiB/row)
    per_row = 2 * (2 * D * itemsize + 512) + 12 * D + 2048
    tile_n = max(row_mult, (budget // per_row) // row_mult * row_mult)

    n_pad = ((N + row_mult - 1) // row_mult) * row_mult
    tile_n = min(tile_n, n_pad)
    num_tiles = pl.cdiv(N, tile_n)

    # If even the minimal tile cannot fit under the default limit (extreme D),
    # push the scoped limit toward physical VMEM.
    # TODO(synk): for D large enough that a row_mult-row tile exceeds physical
    # VMEM, add a feature-dim grid axis ("arbitrary") with partial-sum scratch.
    min_needed = row_mult * per_row + (1 << 20)
    vmem_limit = max(vmem_limit, min(min_needed, 112 * 1024 * 1024))

    labels_2d = labels.astype(jnp.float32).reshape(N, 1)
    kernel = functools.partial(_pairwise_loss_kernel, n_rows=N)

    partials = pl.pallas_call(
        kernel,
        out_shape=jax.ShapeDtypeStruct((num_tiles, 8, 128), jnp.float32),
        grid=(num_tiles,),
        in_specs=[
            # Block width == full D: no host-side lane padding needed.
            pl.BlockSpec((tile_n, D), lambda i: (i, 0)),
            pl.BlockSpec((tile_n, D), lambda i: (i, 0)),
            pl.BlockSpec((tile_n, 1), lambda i: (i, 0)),
        ],
        out_specs=pl.BlockSpec((1, 8, 128), lambda i: (i, 0, 0)),
        compiler_params=pltpu.CompilerParams(
            dimension_semantics=("parallel",),
            vmem_limit_bytes=int(vmem_limit),
        ),
    )(emb1, emb2, labels_2d)

    # Finish the mean in JAX (grid axis stays "parallel"; divide by the true N).
    return jnp.sum(partials[:, 0, 0]) / N


def pairwise_loss_ref(emb1, emb2, labels):
    """Pure-JAX reference mirroring the torch module."""
    e1 = emb1.astype(jnp.float32)
    e2 = emb2.astype(jnp.float32)
    lbl = labels.astype(jnp.float32)
    dot = jnp.sum(e1 * e2, axis=1)
    n1 = jnp.maximum(jnp.sqrt(jnp.sum(e1 * e1, axis=1)), EPS)
    n2 = jnp.maximum(jnp.sqrt(jnp.sum(e2 * e2, axis=1)), EPS)
    sim = dot / (n1 * n2)
    loss = lbl * (1.0 - sim) + (1.0 - lbl) * jnp.maximum(MARGIN - sim, 0.0)
    return jnp.mean(loss)


if __name__ == "__main__":
    key = jax.random.PRNGKey(0)
    k1, k2, k3, k4, k5, k6 = jax.random.split(key, 6)

    # Case 1: small f32 batch, D=32 (< 128 lanes, exercises the full-dim block
    # waiver of the 128-lane divisibility rule).
    N1, D1 = 8, 32
    e1a = jax.random.normal(k1, (N1, D1), dtype=jnp.float32)
    e2a = jax.random.normal(k2, (N1, D1), dtype=jnp.float32)
    lbla = jax.random.bernoulli(k3, p=0.5, shape=(N1,)).astype(jnp.float32)

    out1 = jax.block_until_ready(pairwise_loss(e1a, e2a, lbla))
    ref1 = jax.block_until_ready(pairwise_loss_ref(e1a, e2a, lbla))
    assert jnp.allclose(out1, ref1, atol=1e-5, rtol=1e-5), (out1, ref1)

    # Case 2: bf16 inputs, non-multiple-of-128 D and ragged N (exercises
    # unpadded-D lane masking in the axis-1 reductions, last-tile row masking
    # and native-dtype DMA).
    N2, D2 = 13, 200
    e1b = jax.random.normal(k4, (N2, D2), dtype=jnp.float32).astype(jnp.bfloat16)
    e2b = jax.random.normal(k5, (N2, D2), dtype=jnp.float32).astype(jnp.bfloat16)
    lblb = jax.random.bernoulli(k6, p=0.5, shape=(N2,)).astype(jnp.float32)

    out2 = jax.block_until_ready(pairwise_loss(e1b, e2b, lblb))
    ref2 = jax.block_until_ready(pairwise_loss_ref(e1b, e2b, lblb))
    assert jnp.allclose(out2, ref2, atol=1e-5, rtol=1e-5), (out2, ref2)

    print("KERNEL_OK")
</pallas_src>

<mosaic_0001>
module attributes {stable_mosaic.version = 11 : i64} {
  func.func @_pairwise_loss_kernel(%arg0: i32, %arg1: memref<8x32xf32, #tpu.memory_space<vmem>>, %arg2: memref<8x32xf32, #tpu.memory_space<vmem>>, %arg3: memref<8x1xf32, #tpu.memory_space<vmem>>, %arg4: memref<1x8x128xf32, #tpu.memory_space<vmem>>) attributes {dimension_semantics = [#tpu.dimension_semantics<parallel>], iteration_bounds = array<i64: 1>, scalar_prefetch = 0 : i64, scratch_operands = 0 : i64, tpu.core_type = #tpu.core_type<tc>, window_params = [{transform_indices = @transform_0, window_bounds = array<i64: 8, 32>}, {transform_indices = @transform_1, window_bounds = array<i64: 8, 32>}, {transform_indices = @transform_2, window_bounds = array<i64: 8, 1>}, {transform_indices = @transform_3, window_bounds = array<i64: 1, 8, 128>}]} {
    %c0 = arith.constant 0 : index
    %c0_0 = arith.constant 0 : index
    %0 = vector.load %arg1[%c0, %c0_0] : memref<8x32xf32, #tpu.memory_space<vmem>>, vector<8x32xf32>
    %c0_1 = arith.constant 0 : index
    %c0_2 = arith.constant 0 : index
    %1 = vector.load %arg2[%c0_1, %c0_2] : memref<8x32xf32, #tpu.memory_space<vmem>>, vector<8x32xf32>
    %c0_3 = arith.constant 0 : index
    %c0_4 = arith.constant 0 : index
    %2 = vector.load %arg3[%c0_3, %c0_4] : memref<8x1xf32, #tpu.memory_space<vmem>>, vector<8x1xf32>
    %3 = arith.mulf %0, %1 : vector<8x32xf32>
    %cst = arith.constant dense<0.000000e+00> : vector<8xf32>
    %4 = vector.multi_reduction <add>, %3, %cst [1] : vector<8x32xf32> to vector<8xf32>
    %5 = vector.shape_cast %4 : vector<8xf32> to vector<8x1xf32>
    %6 = arith.mulf %0, %0 : vector<8x32xf32>
    %cst_5 = arith.constant dense<0.000000e+00> : vector<8xf32>
    %7 = vector.multi_reduction <add>, %6, %cst_5 [1] : vector<8x32xf32> to vector<8xf32>
    %8 = vector.shape_cast %7 : vector<8xf32> to vector<8x1xf32>
    %9 = arith.mulf %1, %1 : vector<8x32xf32>
    %cst_6 = arith.constant dense<0.000000e+00> : vector<8xf32>
    %10 = vector.multi_reduction <add>, %9, %cst_6 [1] : vector<8x32xf32> to vector<8xf32>
    %11 = vector.shape_cast %10 : vector<8xf32> to vector<8x1xf32>
    %cst_7 = arith.constant 1.000000e-16 : f32
    %12 = vector.broadcast %cst_7 : f32 to vector<8x1xf32>
    %13 = arith.maximumf %8, %12 : vector<8x1xf32>
    %14 = math.rsqrt %13 : vector<8x1xf32>
    %cst_8 = arith.constant 1.000000e-16 : f32
    %15 = vector.broadcast %cst_8 : f32 to vector<8x1xf32>
    %16 = arith.maximumf %11, %15 : vector<8x1xf32>
    %17 = math.rsqrt %16 : vector<8x1xf32>
    %18 = arith.mulf %14, %17 : vector<8x1xf32>
    %19 = arith.mulf %5, %18 : vector<8x1xf32>
    %cst_9 = arith.constant 1.000000e+00 : f32
    %20 = vector.broadcast %cst_9 : f32 to vector<8x1xf32>
    %21 = arith.subf %20, %19 : vector<8x1xf32>
    %22 = arith.mulf %2, %21 : vector<8x1xf32>
    %cst_10 = arith.constant 1.000000e+00 : f32
    %23 = vector.broadcast %cst_10 : f32 to vector<8x1xf32>
    %24 = arith.subf %23, %2 : vector<8x1xf32>
    %cst_11 = arith.constant 1.000000e-01 : f32
    %25 = vector.broadcast %cst_11 : f32 to vector<8x1xf32>
    %26 = arith.subf %25, %19 : vector<8x1xf32>
    %cst_12 = arith.constant 0.000000e+00 : f32
    %27 = vector.broadcast %cst_12 : f32 to vector<8x1xf32>
    %28 = arith.maximumf %26, %27 : vector<8x1xf32>
    %29 = arith.mulf %24, %28 : vector<8x1xf32>
    %30 = arith.addf %22, %29 : vector<8x1xf32>
    %31 = tpu.iota {dimensions = array<i32: 0>} : vector<8x1xi32>
    %c8_i32 = arith.constant 8 : i32
    %32 = arith.muli %arg0, %c8_i32 : i32
    %33 = vector.broadcast %32 : i32 to vector<8x1xi32>
    %34 = arith.addi %31, %33 : vector<8x1xi32>
    %c8_i32_13 = arith.constant 8 : i32
    %35 = vector.broadcast %c8_i32_13 : i32 to vector<8x1xi32>
    %36 = arith.cmpi slt, %34, %35 : vector<8x1xi32>
    %cst_14 = arith.constant 0.000000e+00 : f32
    %37 = vector.broadcast %cst_14 : f32 to vector<8x1xf32>
    %38 = arith.select %36, %30, %37 : vector<8x1xi1>, vector<8x1xf32>
    %39 = vector.shape_cast %38 : vector<8x1xf32> to vector<1x8x1xf32>
    %cst_15 = arith.constant dense<0.000000e+00> : vector<1xf32>
    %40 = vector.multi_reduction <add>, %39, %cst_15 [1, 2] : vector<1x8x1xf32> to vector<1xf32>
    %41 = vector.shape_cast %40 : vector<1xf32> to vector<1x1x1xf32>
    %42 = vector.extract %41[0, 0, 0] : f32 from vector<1x1x1xf32>
    %43 = vector.broadcast %42 : f32 to vector<1x8x128xf32>
    %c0_16 = arith.constant 0 : index
    %c0_17 = arith.constant 0 : index
    %c0_18 = arith.constant 0 : index
    %44 = vector.load %arg4[%c0_16, %c0_17, %c0_18] : memref<1x8x128xf32, #tpu.memory_space<vmem>>, vector<1x8x128xf32>
    tpu.vector_store %arg4[%c0_16, %c0_17, %c0_18], %43 {strides = array<i32>} : memref<1x8x128xf32, #tpu.memory_space<vmem>>, vector<1x8x128xf32>,
    return
  }
  func.func @transform_0(%arg0: i32) -> (i32, i32) {
    %c0_i32 = arith.constant 0 : i32
    %c0_i32_0 = arith.constant 0 : i32
    return %arg0, %c0_i32 : i32, i32
  }
  func.func @transform_1(%arg0: i32) -> (i32, i32) {
    %c0_i32 = arith.constant 0 : i32
    %c0_i32_0 = arith.constant 0 : i32
    return %arg0, %c0_i32 : i32, i32
  }
  func.func @transform_2(%arg0: i32) -> (i32, i32) {
    %c0_i32 = arith.constant 0 : i32
    %c0_i32_0 = arith.constant 0 : i32
    return %arg0, %c0_i32 : i32, i32
  }
  func.func @transform_3(%arg0: i32) -> (i32, i32, i32) {
    %c0_i32 = arith.constant 0 : i32
    %c0_i32_0 = arith.constant 0 : i32
    %c0_i32_1 = arith.constant 0 : i32
    return %arg0, %c0_i32, %c0_i32_0 : i32, i32, i32
  }
}

</mosaic_0001>

<llo_original>
// kernel: tpu_custom_call.1
$region0: #{tpu_custom_call.1}
  #allocation0 [shape = 'u32[]', space=smem, size = 0x4, offset = 0x4, fixed_abs, tag = 'smem constant byte address 0x4 - core index']
  #allocation1 [shape = 'u32[144,128]{1,0:T(1,128)}', space=vmem, size = 0x12000, scoped, tag = 'internal scratch']
  %s0 = inlined_call_operand.vmem [shape: f32[8,32], index: 0, kind: input, shape index: {}]
  %s1 = inlined_call_operand.hbm [shape: f32[8,32], index: 1, kind: input, shape index: {}]
  %s2 = inlined_call_operand.vmem [shape: f32[8,1], index: 2, kind: input, shape index: {}]
  %s3 = inlined_call_operand.hbm [shape: f32[1,8,128], index: 3, kind: output, shape index: {}]
  %s4 = sld [smem:[#allocation0]]
  $region26: #{tpu_custom_call.1} parent=0
    _
  %s6 = ssub.s32 1, %s4
  %s7 = scalar_select 0, %s6, %s4
  $region1: #{tpu_custom_call.1} parent=0
    #allocation2 [shape = 'u8[4096]{0}', space=vmem, size = 0x1000, scoped, tag = 'input window, operand 1, single buffered']
    #allocation3 [shape = 's32[1]{0}', space=sflag, size = 0x4, scoped, tag = 'scoped memory for tpu_custom_call.1']
    #allocation4 [shape = 's32[1]{0}', space=sflag, size = 0x4, scoped, tag = 'scoped memory for tpu_custom_call.1']
    #allocation5 [shape = 'u8[4096]{0}', space=vmem, size = 0x1000, scoped, tag = 'output window, operand 0, single buffered']
    %8 = vsyncpa [#allocation3], 0
    %9 = vsyncpa [#allocation4], 0
    // Predicated region
    $region2: #{tpu_custom_call.1} parent=1 // pred_check
      _
    $region3: #{tpu_custom_call.1} parent=1 // pred_check_branch
      %11 = sbr.rel (0) target = $region5
    $region4: #{tpu_custom_call.1} parent=1 // pred_region
      _
    $region5: #{tpu_custom_call.1} parent=1 // pred_fallthru
      _
    // Predicated region
    $region6: #{tpu_custom_call.1} parent=1 // pred_check
      _
    $region7: #{tpu_custom_call.1} parent=1 // pred_check_branch
      %13 = sbr.rel (0) target = $region9
    $region8: #{tpu_custom_call.1} parent=1 // pred_region
      %s15 = ssub.s32 128, 128
      %16 = vsyncadd [#allocation3], %s15
      %s18 = sshll.u32 [#allocation2], 4
      %s19 = int_to_ptr.vmem [resolvable:$true] %s18
      %21 = dma.hbm_to_vmem [thread:$0]  %s1, 128, %s19, [#allocation3]
    $region9: #{tpu_custom_call.1} parent=1 // pred_fallthru
      _
    // Predicated region
    $region10: #{tpu_custom_call.1} parent=1 // pred_check
      _
    $region11: #{tpu_custom_call.1} parent=1 // pred_check_branch
      %23 = sbr.rel (0) target = $region13
    $region12: #{tpu_custom_call.1} parent=1 // pred_region
      _
    $region13: #{tpu_custom_call.1} parent=1 // pred_fallthru
      _
    // Predicated region
    $region14: #{tpu_custom_call.1} parent=1 // pred_check
      _
    $region15: #{tpu_custom_call.1} parent=1 // pred_check_branch
      %25 = sbr.rel (0) target = $region17
    $region16: #{tpu_custom_call.1} parent=1 // pred_region
      %26 = dma.done [#allocation3], 128
    $region17: #{tpu_custom_call.1} parent=1 // pred_fallthru
      _
    %v27 = vld [vmem:[%s0] sm:$0xff]
    %v28 = vld [vmem:[#allocation2] sm:$0xff]
    %v29 = vld [vmem:[%s2] sm:$0xff]
    %v30 = vmul.f32 %v27, %v28
    %vm31 = vcmask 261120
    %v32 = vsel %vm31, %v30, 0.0
    %33 = vadd.xlane.f32.xlu0 %v32
    %v34 = vpop.xlane.xlu0 %33
    %v35 = vmul.f32 %v27, %v27
    %v36 = vsel %vm31, %v35, 0.0
    %37 = vadd.xlane.f32.xlu0 %v36
    %v38 = vpop.xlane.xlu0 %37
    %v39 = vmul.f32 %v28, %v28
    %v40 = vsel %vm31, %v39, 0.0
    %41 = vadd.xlane.f32.xlu0 %v40
    %v42 = vpop.xlane.xlu0 %41
    %v43 = vmax.f32 %v38, 1e-16
    %v44 = vrsqrt.pop %v43
    %v45 = vmax.f32 %v42, 1e-16
    %v46 = vrsqrt.pop %v45
    %v47 = vmul.f32 %v44, %v46
    %v48 = vmul.f32 %v34, %v47
    %v49 = vsub.f32 1.0, %v48
    %v50 = vmul.f32 %v29, %v49
    %v51 = vsub.f32 1.0, %v29
    %v52 = vsub.f32 0.1, %v48
    %v53 = vmax.f32 %v52, 0.0
    %v54 = vmul.f32 %v51, %v53
    %v55 = vadd.f32 %v50, %v54
    %v56 = vlaneseq
    %v57 = vshrl.u32 %v56, 7
    %s58 = smul.u32 0, 8
    %v59 = vstv %s58
    %v60 = vadd.s32 %v57, %v59
    %vm61 = vcmp.lt.s32.totalorder %v60, 8
    %v62 = vsel %vm61, %v55, 0.0
    %vm63 = vcmask 7168
    %v64 = vsel %vm63, %v62, 0.0
    %65 = vadd.xlane.f32.xlu0 %v64
    %v66 = vpop.xlane.xlu0 %65
    %v67 = vrot.slane %v66, 4
    %v68 = vadd.f32 %v66, %v67
    %v69 = vrot.slane %v68, 2
    %v70 = vadd.f32 %v68, %v69
    %v71 = vrot.slane %v70, 1
    %v72 = vadd.f32 %v70, %v71
    %s73 = vtos %v72
    %v74 = vstv %s73
    %75 = vst [vmem:[#allocation5] sm:$0xff] %v74
    // Predicated region
    $region18: #{tpu_custom_call.1} parent=1 // pred_check
      _
    $region19: #{tpu_custom_call.1} parent=1 // pred_check_branch
      %77 = sbr.rel (0) target = $region21
    $region20: #{tpu_custom_call.1} parent=1 // pred_region
      %s79 = ssub.s32 128, 128
      %80 = vsyncadd [#allocation4], %s79
      %s82 = sshll.u32 [#allocation5], 4
      %s83 = int_to_ptr.vmem [resolvable:$true] %s82
      %85 = dma.vmem_to_hbm [thread:$0]  %s83, 128, %s3, [#allocation4]
    $region21: #{tpu_custom_call.1} parent=1 // pred_fallthru
      _
    // Predicated region
    $region22: #{tpu_custom_call.1} parent=1 // pred_check
      _
    $region23: #{tpu_custom_call.1} parent=1 // pred_check_branch
      %87 = sbr.rel (0) target = $region25
    $region24: #{tpu_custom_call.1} parent=1 // pred_region
      %88 = dma.done [#allocation4], 128
    $region25: #{tpu_custom_call.1} parent=1 // pred_fallthru
      _
    %89 = vsyncpa [#allocation3], 1
    %90 = vsyncpa [#allocation4], 1

</llo_original>
